<compile_context>
chip_gen: v5e
topology: v5e:2x2
jax: 0.10.0
libtpu: 0.0.40
codegen_flags: <defaults>
</compile_context>

<pallas_src>
import functools

import jax
import jax.numpy as jnp
from jax.experimental import pallas as pl
from jax.experimental.pallas import tpu as pltpu

IN_FEATURES = 1000
OUT_FEATURES = 38


def _round_up(n, m):
    return ((n + m - 1) // m) * m


def _mynet_kernel(x_ref, w_ref, b_ref, o_ref):
    # ReLU(x) @ W + b.  W is already pre-transposed to (K, N): no in-kernel
    # transpose (no XLU pass / VMEM temp). Accumulation stays in f32 on the MXU.
    x = jnp.maximum(x_ref[...], 0.0)
    acc = jnp.dot(x, w_ref[...], preferred_element_type=jnp.float32)
    o_ref[...] = (acc + b_ref[...]).astype(o_ref.dtype)


@functools.partial(jax.jit, static_argnames=("block_b", "input_dtype"))
def mynet_forward(x, weight, bias, *, block_b=2048, input_dtype=None):
    """x: (B, 1000); weight: (38, 1000); bias: (38,) -> (B, 38) float32."""
    B = x.shape[0]

    # Optional reduced-precision storage for the dominant HBM streams
    # (v6e/v7x lever; accumulation remains f32). Off by default: changes numerics.
    if input_dtype is not None:
        x = x.astype(input_dtype)
        weight = weight.astype(input_dtype)

    # Weight prep (tiny; hoisted/fused under jit): (38,1000) -> (1000,38).
    w_t = weight.T
    b2 = bias.reshape(1, OUT_FEATURES).astype(jnp.float32)

    # Batch tile selection.
    if B <= 8:
        tb = B  # single full-extent block: no masking needed at all
    else:
        # Multiple of 8 (sublane rule); capped by block_b (double-buffered f32
        # x tiles at tb=2048 are ~15.6 MiB, well under the 32 MiB VMEM limit)
        # and by round8(ceil(B/2)) so there are >= 2 grid steps (v7x megacore).
        tb = min(block_b, _round_up(pl.cdiv(B, 2), 8))
    grid = (pl.cdiv(B, tb),)

    x_bytes = x.dtype.itemsize
    w_bytes = w_t.dtype.itemsize

    out = pl.pallas_call(
        _mynet_kernel,
        out_shape=jax.ShapeDtypeStruct((B, OUT_FEATURES), jnp.float32),
        grid_spec=pltpu.PrefetchScalarGridSpec(
            num_scalar_prefetch=0,
            grid=grid,
            in_specs=[
                # x: streamed per batch tile, unpadded full K=1000 last dim.
                pl.BlockSpec((tb, IN_FEATURES), lambda i: (i, 0)),
                # weight / bias: constant index_map -> fetched once, VMEM-resident.
                pl.BlockSpec((IN_FEATURES, OUT_FEATURES), lambda i: (0, 0)),
                pl.BlockSpec((1, OUT_FEATURES), lambda i: (0, 0)),
            ],
            # Output emitted directly at (tb, 38): masked vst is cheap here
            # (the kernel is HBM-bound on the x stream, not the store slot)
            # and it removes the padded writeback + wrapper slice.
            out_specs=pl.BlockSpec((tb, OUT_FEATURES), lambda i: (i, 0)),
        ),
        compiler_params=pltpu.CompilerParams(
            dimension_semantics=("parallel",),     # megacore-shard the batch grid
            vmem_limit_bytes=32 * 1024 * 1024,     # safe on v5e/v6e/v7x
        ),
        cost_estimate=pl.CostEstimate(
            flops=2 * B * IN_FEATURES * OUT_FEATURES,
            transcendentals=0,
            bytes_accessed=(
                x_bytes * B * IN_FEATURES
                + w_bytes * IN_FEATURES * OUT_FEATURES
                + 4 * (B * OUT_FEATURES + OUT_FEATURES)
            ),
        ),
    )(x, w_t, b2)

    return out


def mynet_reference(x, weight, bias):
    return jnp.maximum(x, 0.0) @ weight.T + bias


if __name__ == "__main__":
    key = jax.random.PRNGKey(0)
    kx, kw, kb = jax.random.split(key, 3)

    # Small batch consistent with the module's (B, 1000) input.
    B = 2
    x = jax.random.normal(kx, (B, IN_FEATURES), dtype=jnp.float32)

    # Deterministic params (mimics nn.Linear uniform(-1/sqrt(fan_in), 1/sqrt(fan_in))).
    bound = 1.0 / (IN_FEATURES ** 0.5)
    weight = jax.random.uniform(
        kw, (OUT_FEATURES, IN_FEATURES), minval=-bound, maxval=bound, dtype=jnp.float32
    )
    bias = jax.random.uniform(
        kb, (OUT_FEATURES,), minval=-bound, maxval=bound, dtype=jnp.float32
    )

    out = mynet_forward(x, weight, bias)
    out = jax.block_until_ready(out)

    ref = mynet_reference(x, weight, bias)
    assert out.shape == (B, OUT_FEATURES)
    assert jnp.allclose(out, ref, atol=1e-4, rtol=1e-4)

    print("KERNEL_OK")
</pallas_src>

<mosaic_0001>
module attributes {stable_mosaic.version = 11 : i64} {
  func.func @_mynet_kernel(%arg0: i32, %arg1: memref<2x1000xf32, #tpu.memory_space<vmem>>, %arg2: memref<1000x38xf32, #tpu.memory_space<vmem>>, %arg3: memref<1x38xf32, #tpu.memory_space<vmem>>, %arg4: memref<2x38xf32, #tpu.memory_space<vmem>>) attributes {dimension_semantics = [#tpu.dimension_semantics<parallel>], iteration_bounds = array<i64: 1>, scalar_prefetch = 0 : i64, scratch_operands = 0 : i64, tpu.core_type = #tpu.core_type<tc>, window_params = [{transform_indices = @transform_0, window_bounds = array<i64: 2, 1000>}, {pipeline_mode = #tpu.pipeline_mode<synchronous>, transform_indices = @transform_1, window_bounds = array<i64: 1000, 38>}, {pipeline_mode = #tpu.pipeline_mode<synchronous>, transform_indices = @transform_2, window_bounds = array<i64: 1, 38>}, {transform_indices = @transform_3, window_bounds = array<i64: 2, 38>}]} {
    %c0 = arith.constant 0 : index
    %c0_0 = arith.constant 0 : index
    %0 = vector.load %arg1[%c0, %c0_0] : memref<2x1000xf32, #tpu.memory_space<vmem>>, vector<2x1000xf32>
    %cst = arith.constant 0.000000e+00 : f32
    %1 = vector.broadcast %cst : f32 to vector<2x1000xf32>
    %2 = arith.maximumf %0, %1 : vector<2x1000xf32>
    %c0_1 = arith.constant 0 : index
    %c0_2 = arith.constant 0 : index
    %3 = vector.load %arg2[%c0_1, %c0_2] : memref<1000x38xf32, #tpu.memory_space<vmem>>, vector<1000x38xf32>
    %cst_3 = arith.constant dense<0.000000e+00> : vector<2x38xf32>
    %4 = tpu.matmul %2, %3, %cst_3 {dimension_numbers = #tpu.dot_dimension_numbers<[1], [0], [0], [1], [0, 0, 1, 1], [], []>} : vector<2x1000xf32>, vector<1000x38xf32>, vector<2x38xf32> -> vector<2x38xf32>
    %c0_4 = arith.constant 0 : index
    %c0_5 = arith.constant 0 : index
    %5 = vector.load %arg3[%c0_4, %c0_5] : memref<1x38xf32, #tpu.memory_space<vmem>>, vector<1x38xf32>
    %6 = vector.broadcast %5 : vector<1x38xf32> to vector<2x38xf32>
    %7 = arith.addf %4, %6 : vector<2x38xf32>
    %c0_6 = arith.constant 0 : index
    %c0_7 = arith.constant 0 : index
    %8 = vector.load %arg4[%c0_6, %c0_7] : memref<2x38xf32, #tpu.memory_space<vmem>>, vector<2x38xf32>
    tpu.vector_store %arg4[%c0_6, %c0_7], %7 {strides = array<i32>} : memref<2x38xf32, #tpu.memory_space<vmem>>, vector<2x38xf32>,
    return
  }
  func.func @transform_0(%arg0: i32) -> (i32, i32) {
    %c0_i32 = arith.constant 0 : i32
    %c0_i32_0 = arith.constant 0 : i32
    return %arg0, %c0_i32 : i32, i32
  }
  func.func @transform_1(%arg0: i32) -> (i32, i32) {
    %c0_i32 = arith.constant 0 : i32
    %c0_i32_0 = arith.constant 0 : i32
    %c0_i32_1 = arith.constant 0 : i32
    return %c0_i32, %c0_i32_0 : i32, i32
  }
  func.func @transform_2(%arg0: i32) -> (i32, i32) {
    %c0_i32 = arith.constant 0 : i32
    %c0_i32_0 = arith.constant 0 : i32
    %c0_i32_1 = arith.constant 0 : i32
    return %c0_i32, %c0_i32_0 : i32, i32
  }
  func.func @transform_3(%arg0: i32) -> (i32, i32) {
    %c0_i32 = arith.constant 0 : i32
    %c0_i32_0 = arith.constant 0 : i32
    return %arg0, %c0_i32 : i32, i32
  }
}

</mosaic_0001>

<llo_original>
// kernel: mynet_forward.1
$region0: #{mynet_forward.1}
  #allocation0 [shape = 'u32[]', space=smem, size = 0x4, offset = 0x4, fixed_abs, tag = 'smem constant byte address 0x4 - core index']
  #allocation1 [shape = 'u32[72,128]{1,0:T(1,128)}', space=vmem, size = 0x9000, scoped, tag = 'internal scratch']
  %s0 = inlined_call_operand.vmem [shape: f32[2,1000], index: 0, kind: input, shape index: {}]
  %s1 = inlined_call_operand.vmem [shape: f32[1000,38], index: 1, kind: input, shape index: {}]
  %s2 = inlined_call_operand.vmem [shape: f32[1,38], index: 2, kind: input, shape index: {}]
  %s3 = inlined_call_operand.hbm [shape: f32[2,38], index: 3, kind: output, shape index: {}]
  %s4 = sld [smem:[#allocation0]]
  $region22: #{mynet_forward.1} parent=0
    _
  %s6 = ssub.s32 1, %s4
  %s7 = scalar_select 0, %s6, %s4
  $region1: #{mynet_forward.1} parent=0
    #allocation2 [shape = 'u8[1024]{0}', space=vmem, size = 0x400, scoped, tag = 'output window, operand 0, single buffered']
    #allocation3 [shape = 's32[1]{0}', space=sflag, size = 0x4, scoped, tag = 'scoped memory for mynet_forward.1']
    %8 = vsyncpa [#allocation3], 0
    // Predicated region
    $region2: #{mynet_forward.1} parent=1 // pred_check
      _
    $region3: #{mynet_forward.1} parent=1 // pred_check_branch
      %10 = sbr.rel (0) target = $region5
    $region4: #{mynet_forward.1} parent=1 // pred_region
      _
    $region5: #{mynet_forward.1} parent=1 // pred_fallthru
      _
    // Predicated region
    $region6: #{mynet_forward.1} parent=1 // pred_check
      _
    $region7: #{mynet_forward.1} parent=1 // pred_check_branch
      %12 = sbr.rel (0) target = $region9
    $region8: #{mynet_forward.1} parent=1 // pred_region
      _
    $region9: #{mynet_forward.1} parent=1 // pred_fallthru
      _
    // Predicated region
    $region10: #{mynet_forward.1} parent=1 // pred_check
      _
    $region11: #{mynet_forward.1} parent=1 // pred_check_branch
      %14 = sbr.rel (0) target = $region13
    $region12: #{mynet_forward.1} parent=1 // pred_region
      _
    $region13: #{mynet_forward.1} parent=1 // pred_fallthru
      _
    %v15 = vld [vmem:[%s0] sm:$0xff]
    %v16 = vld [vmem:[%s0 + $0x8] sm:$0xff]
    %v17 = vmax.f32 %v15, 0.0
    %v18 = vmax.f32 %v16, 0.0
    %v19 = vld [vmem:[%s1] sm:$0xff]
    %v20 = vld [vmem:[%s1 + $0x8] sm:$0xff]
    %v21 = vld [vmem:[%s1 + $0x10] sm:$0xff]
    %v22 = vld [vmem:[%s1 + $0x18] sm:$0xff]
    %v23 = vld [vmem:[%s1 + $0x20] sm:$0xff]
    %v24 = vld [vmem:[%s1 + $0x28] sm:$0xff]
    %v25 = vld [vmem:[%s1 + $0x30] sm:$0xff]
    %v26 = vld [vmem:[%s1 + $0x38] sm:$0xff]
    %v27 = vld [vmem:[%s1 + $0x40] sm:$0xff]
    %v28 = vld [vmem:[%s1 + $0x48] sm:$0xff]
    %v29 = vld [vmem:[%s1 + $0x50] sm:$0xff]
    %v30 = vld [vmem:[%s1 + $0x58] sm:$0xff]
    %v31 = vld [vmem:[%s1 + $0x60] sm:$0xff]
    %v32 = vld [vmem:[%s1 + $0x68] sm:$0xff]
    %v33 = vld [vmem:[%s1 + $0x70] sm:$0xff]
    %v34 = vld [vmem:[%s1 + $0x78] sm:$0xff]
    %v35 = vld [vmem:[%s1 + $0x80] sm:$0xff]
    %v36 = vld [vmem:[%s1 + $0x88] sm:$0xff]
    %v37 = vld [vmem:[%s1 + $0x90] sm:$0xff]
    %v38 = vld [vmem:[%s1 + $0x98] sm:$0xff]
    %v39 = vld [vmem:[%s1 + $0xa0] sm:$0xff]
    %v40 = vld [vmem:[%s1 + $0xa8] sm:$0xff]
    %v41 = vld [vmem:[%s1 + $0xb0] sm:$0xff]
    %v42 = vld [vmem:[%s1 + $0xb8] sm:$0xff]
    %v43 = vld [vmem:[%s1 + $0xc0] sm:$0xff]
    %v44 = vld [vmem:[%s1 + $0xc8] sm:$0xff]
    %v45 = vld [vmem:[%s1 + $0xd0] sm:$0xff]
    %v46 = vld [vmem:[%s1 + $0xd8] sm:$0xff]
    %v47 = vld [vmem:[%s1 + $0xe0] sm:$0xff]
    %v48 = vld [vmem:[%s1 + $0xe8] sm:$0xff]
    %v49 = vld [vmem:[%s1 + $0xf0] sm:$0xff]
    %v50 = vld [vmem:[%s1 + $0xf8] sm:$0xff]
    %v51 = vld [vmem:[%s1 + $0x100] sm:$0xff]
    %v52 = vld [vmem:[%s1 + $0x108] sm:$0xff]
    %v53 = vld [vmem:[%s1 + $0x110] sm:$0xff]
    %v54 = vld [vmem:[%s1 + $0x118] sm:$0xff]
    %v55 = vld [vmem:[%s1 + $0x120] sm:$0xff]
    %v56 = vld [vmem:[%s1 + $0x128] sm:$0xff]
    %v57 = vld [vmem:[%s1 + $0x130] sm:$0xff]
    %v58 = vld [vmem:[%s1 + $0x138] sm:$0xff]
    %v59 = vld [vmem:[%s1 + $0x140] sm:$0xff]
    %v60 = vld [vmem:[%s1 + $0x148] sm:$0xff]
    %v61 = vld [vmem:[%s1 + $0x150] sm:$0xff]
    %v62 = vld [vmem:[%s1 + $0x158] sm:$0xff]
    %v63 = vld [vmem:[%s1 + $0x160] sm:$0xff]
    %v64 = vld [vmem:[%s1 + $0x168] sm:$0xff]
    %v65 = vld [vmem:[%s1 + $0x170] sm:$0xff]
    %v66 = vld [vmem:[%s1 + $0x178] sm:$0xff]
    %v67 = vld [vmem:[%s1 + $0x180] sm:$0xff]
    %v68 = vld [vmem:[%s1 + $0x188] sm:$0xff]
    %v69 = vld [vmem:[%s1 + $0x190] sm:$0xff]
    %v70 = vld [vmem:[%s1 + $0x198] sm:$0xff]
    %v71 = vld [vmem:[%s1 + $0x1a0] sm:$0xff]
    %v72 = vld [vmem:[%s1 + $0x1a8] sm:$0xff]
    %v73 = vld [vmem:[%s1 + $0x1b0] sm:$0xff]
    %v74 = vld [vmem:[%s1 + $0x1b8] sm:$0xff]
    %v75 = vld [vmem:[%s1 + $0x1c0] sm:$0xff]
    %v76 = vld [vmem:[%s1 + $0x1c8] sm:$0xff]
    %v77 = vld [vmem:[%s1 + $0x1d0] sm:$0xff]
    %v78 = vld [vmem:[%s1 + $0x1d8] sm:$0xff]
    %v79 = vld [vmem:[%s1 + $0x1e0] sm:$0xff]
    %v80 = vld [vmem:[%s1 + $0x1e8] sm:$0xff]
    %v81 = vld [vmem:[%s1 + $0x1f0] sm:$0xff]
    %v82 = vld [vmem:[%s1 + $0x1f8] sm:$0xff]
    %v83 = vld [vmem:[%s1 + $0x200] sm:$0xff]
    %v84 = vld [vmem:[%s1 + $0x208] sm:$0xff]
    %v85 = vld [vmem:[%s1 + $0x210] sm:$0xff]
    %v86 = vld [vmem:[%s1 + $0x218] sm:$0xff]
    %v87 = vld [vmem:[%s1 + $0x220] sm:$0xff]
    %v88 = vld [vmem:[%s1 + $0x228] sm:$0xff]
    %v89 = vld [vmem:[%s1 + $0x230] sm:$0xff]
    %v90 = vld [vmem:[%s1 + $0x238] sm:$0xff]
    %v91 = vld [vmem:[%s1 + $0x240] sm:$0xff]
    %v92 = vld [vmem:[%s1 + $0x248] sm:$0xff]
    %v93 = vld [vmem:[%s1 + $0x250] sm:$0xff]
    %v94 = vld [vmem:[%s1 + $0x258] sm:$0xff]
    %v95 = vld [vmem:[%s1 + $0x260] sm:$0xff]
    %v96 = vld [vmem:[%s1 + $0x268] sm:$0xff]
    %v97 = vld [vmem:[%s1 + $0x270] sm:$0xff]
    %v98 = vld [vmem:[%s1 + $0x278] sm:$0xff]
    %v99 = vld [vmem:[%s1 + $0x280] sm:$0xff]
    %v100 = vld [vmem:[%s1 + $0x288] sm:$0xff]
    %v101 = vld [vmem:[%s1 + $0x290] sm:$0xff]
    %v102 = vld [vmem:[%s1 + $0x298] sm:$0xff]
    %v103 = vld [vmem:[%s1 + $0x2a0] sm:$0xff]
    %v104 = vld [vmem:[%s1 + $0x2a8] sm:$0xff]
    %v105 = vld [vmem:[%s1 + $0x2b0] sm:$0xff]
    %v106 = vld [vmem:[%s1 + $0x2b8] sm:$0xff]
    %v107 = vld [vmem:[%s1 + $0x2c0] sm:$0xff]
    %v108 = vld [vmem:[%s1 + $0x2c8] sm:$0xff]
    %v109 = vld [vmem:[%s1 + $0x2d0] sm:$0xff]
    %v110 = vld [vmem:[%s1 + $0x2d8] sm:$0xff]
    %v111 = vld [vmem:[%s1 + $0x2e0] sm:$0xff]
    %v112 = vld [vmem:[%s1 + $0x2e8] sm:$0xff]
    %v113 = vld [vmem:[%s1 + $0x2f0] sm:$0xff]
    %v114 = vld [vmem:[%s1 + $0x2f8] sm:$0xff]
    %v115 = vld [vmem:[%s1 + $0x300] sm:$0xff]
    %v116 = vld [vmem:[%s1 + $0x308] sm:$0xff]
    %v117 = vld [vmem:[%s1 + $0x310] sm:$0xff]
    %v118 = vld [vmem:[%s1 + $0x318] sm:$0xff]
    %v119 = vld [vmem:[%s1 + $0x320] sm:$0xff]
    %v120 = vld [vmem:[%s1 + $0x328] sm:$0xff]
    %v121 = vld [vmem:[%s1 + $0x330] sm:$0xff]
    %v122 = vld [vmem:[%s1 + $0x338] sm:$0xff]
    %v123 = vld [vmem:[%s1 + $0x340] sm:$0xff]
    %v124 = vld [vmem:[%s1 + $0x348] sm:$0xff]
    %v125 = vld [vmem:[%s1 + $0x350] sm:$0xff]
    %v126 = vld [vmem:[%s1 + $0x358] sm:$0xff]
    %v127 = vld [vmem:[%s1 + $0x360] sm:$0xff]
    %v128 = vld [vmem:[%s1 + $0x368] sm:$0xff]
    %v129 = vld [vmem:[%s1 + $0x370] sm:$0xff]
    %v130 = vld [vmem:[%s1 + $0x378] sm:$0xff]
    %v131 = vld [vmem:[%s1 + $0x380] sm:$0xff]
    %v132 = vld [vmem:[%s1 + $0x388] sm:$0xff]
    %v133 = vld [vmem:[%s1 + $0x390] sm:$0xff]
    %v134 = vld [vmem:[%s1 + $0x398] sm:$0xff]
    %v135 = vld [vmem:[%s1 + $0x3a0] sm:$0xff]
    %v136 = vld [vmem:[%s1 + $0x3a8] sm:$0xff]
    %v137 = vld [vmem:[%s1 + $0x3b0] sm:$0xff]
    %v138 = vld [vmem:[%s1 + $0x3b8] sm:$0xff]
    %v139 = vld [vmem:[%s1 + $0x3c0] sm:$0xff]
    %v140 = vld [vmem:[%s1 + $0x3c8] sm:$0xff]
    %v141 = vld [vmem:[%s1 + $0x3d0] sm:$0xff]
    %v142 = vld [vmem:[%s1 + $0x3d8] sm:$0xff]
    %v143 = vld [vmem:[%s1 + $0x3e0] sm:$0xff]
    %v144 = vld [vmem:[%s2] sm:$0x1]
    %v146 = vperm.slane %v144, 0
    %150 = vst [vmem:[#allocation1] ss:$4 sm:$0xff] %v17
    %s151 = scalar_lea.vmem [#allocation1], 32
    %152 = vst [vmem:[%s151] ss:$4 sm:$0xff] %v18
    %v153 = vld.sshfl [vmem:[#allocation1] sm:$0xff pattern:$0x73625140]
    %v154 = vld.sshfl [vmem:[#allocation1 + $0x8] sm:$0xff pattern:$0x73625140]
    %v155 = vld.sshfl [vmem:[#allocation1 + $0x10] sm:$0xff pattern:$0x73625140]
    %v156 = vld.sshfl [vmem:[#allocation1 + $0x18] sm:$0xff pattern:$0x73625140]
    %v157 = vld.sshfl [vmem:[#allocation1 + $0x20] sm:$0xff pattern:$0x73625140]
    %v158 = vld.sshfl [vmem:[#allocation1 + $0x28] sm:$0xff pattern:$0x73625140]
    %v159 = vld.sshfl [vmem:[#allocation1 + $0x30] sm:$0xff pattern:$0x73625140]
    %v160 = vld.sshfl [vmem:[#allocation1 + $0x38] sm:$0xff pattern:$0x73625140]
    %vm168 = vcmask 850944
    %v169 = vsel %vm168, %v160, 0
    %171 = vmatpush.msra.mxu0 %v34
    %172 = vmatpush.msra.mxu0 %v33
    %173 = vmatpush.msra.mxu0 %v32
    %174 = vmatpush.msra.mxu0 %v31
    %175 = vmatpush.msra.mxu0 %v30
    %176 = vmatpush.msra.mxu0 %v29
    %177 = vmatpush.msra.mxu0 %v28
    %178 = vmatpush.msra.mxu0 %v27
    %179 = vmatpush.msra.mxu0 %v26
    %180 = vmatpush.msra.mxu0 %v25
    %181 = vmatpush.msra.mxu0 %v24
    %182 = vmatpush.msra.mxu0 %v23
    %183 = vmatpush.msra.mxu0 %v22
    %184 = vmatpush.msra.mxu0 %v21
    %185 = vmatpush.msra.mxu0 %v20
    %186 = vmatpush.msra.mxu0 %v19
    %187 = vmatmul.f32.gmra.mxu0 %v153
    %v188 = vpop.f32.mrf.mxu0
    %v189 = vadd.f32 %v146, %v188
    %190 = vdwg.mxu0
    %191 = vmatpush.msra.mxu0 %v50
    %192 = vmatpush.msra.mxu0 %v49
    %193 = vmatpush.msra.mxu0 %v48
    %194 = vmatpush.msra.mxu0 %v47
    %195 = vmatpush.msra.mxu0 %v46
    %196 = vmatpush.msra.mxu0 %v45
    %197 = vmatpush.msra.mxu0 %v44
    %198 = vmatpush.msra.mxu0 %v43
    %199 = vmatpush.msra.mxu0 %v42
    %200 = vmatpush.msra.mxu0 %v41
    %201 = vmatpush.msra.mxu0 %v40
    %202 = vmatpush.msra.mxu0 %v39
    %203 = vmatpush.msra.mxu0 %v38
    %204 = vmatpush.msra.mxu0 %v37
    %205 = vmatpush.msra.mxu0 %v36
    %206 = vmatpush.msra.mxu0 %v35
    %207 = vmatmul.f32.gmra.mxu0 %v154
    %v208 = vpop.f32.mrf.mxu0
    %v209 = vadd.f32 %v189, %v208
    %210 = vdwg.mxu0
    %211 = vmatpush.msra.mxu0 %v66
    %212 = vmatpush.msra.mxu0 %v65
    %213 = vmatpush.msra.mxu0 %v64
    %214 = vmatpush.msra.mxu0 %v63
    %215 = vmatpush.msra.mxu0 %v62
    %216 = vmatpush.msra.mxu0 %v61
    %217 = vmatpush.msra.mxu0 %v60
    %218 = vmatpush.msra.mxu0 %v59
    %219 = vmatpush.msra.mxu0 %v58
    %220 = vmatpush.msra.mxu0 %v57
    %221 = vmatpush.msra.mxu0 %v56
    %222 = vmatpush.msra.mxu0 %v55
    %223 = vmatpush.msra.mxu0 %v54
    %224 = vmatpush.msra.mxu0 %v53
    %225 = vmatpush.msra.mxu0 %v52
    %226 = vmatpush.msra.mxu0 %v51
    %227 = vmatmul.f32.gmra.mxu0 %v155
    %v228 = vpop.f32.mrf.mxu0
    %v229 = vadd.f32 %v209, %v228
    %230 = vdwg.mxu0
    %231 = vmatpush.msra.mxu0 %v82
    %232 = vmatpush.msra.mxu0 %v81
    %233 = vmatpush.msra.mxu0 %v80
    %234 = vmatpush.msra.mxu0 %v79
    %235 = vmatpush.msra.mxu0 %v78
    %236 = vmatpush.msra.mxu0 %v77
    %237 = vmatpush.msra.mxu0 %v76
    %238 = vmatpush.msra.mxu0 %v75
    %239 = vmatpush.msra.mxu0 %v74
    %240 = vmatpush.msra.mxu0 %v73
    %241 = vmatpush.msra.mxu0 %v72
    %242 = vmatpush.msra.mxu0 %v71
    %243 = vmatpush.msra.mxu0 %v70
    %244 = vmatpush.msra.mxu0 %v69
    %245 = vmatpush.msra.mxu0 %v68
    %246 = vmatpush.msra.mxu0 %v67
    %247 = vmatmul.f32.gmra.mxu0 %v156
    %v248 = vpop.f32.mrf.mxu0
    %v249 = vadd.f32 %v229, %v248
    %250 = vdwg.mxu0
    %251 = vmatpush.msra.mxu0 %v98
    %252 = vmatpush.msra.mxu0 %v97
    %253 = vmatpush.msra.mxu0 %v96
    %254 = vmatpush.msra.mxu0 %v95
    %255 = vmatpush.msra.mxu0 %v94
    %256 = vmatpush.msra.mxu0 %v93
    %257 = vmatpush.msra.mxu0 %v92
    %258 = vmatpush.msra.mxu0 %v91
    %259 = vmatpush.msra.mxu0 %v90
    %260 = vmatpush.msra.mxu0 %v89
    %261 = vmatpush.msra.mxu0 %v88
    %262 = vmatpush.msra.mxu0 %v87
    %263 = vmatpush.msra.mxu0 %v86
    %264 = vmatpush.msra.mxu0 %v85
    %265 = vmatpush.msra.mxu0 %v84
    %266 = vmatpush.msra.mxu0 %v83
    %267 = vmatmul.f32.gmra.mxu0 %v157
    %v268 = vpop.f32.mrf.mxu0
    %v269 = vadd.f32 %v249, %v268
    %270 = vdwg.mxu0
    %271 = vmatpush.msra.mxu0 %v114
    %272 = vmatpush.msra.mxu0 %v113
    %273 = vmatpush.msra.mxu0 %v112
    %274 = vmatpush.msra.mxu0 %v111
    %275 = vmatpush.msra.mxu0 %v110
    %276 = vmatpush.msra.mxu0 %v109
    %277 = vmatpush.msra.mxu0 %v108
    %278 = vmatpush.msra.mxu0 %v107
    %279 = vmatpush.msra.mxu0 %v106
    %280 = vmatpush.msra.mxu0 %v105
    %281 = vmatpush.msra.mxu0 %v104
    %282 = vmatpush.msra.mxu0 %v103
    %283 = vmatpush.msra.mxu0 %v102
    %284 = vmatpush.msra.mxu0 %v101
    %285 = vmatpush.msra.mxu0 %v100
    %286 = vmatpush.msra.mxu0 %v99
    %287 = vmatmul.f32.gmra.mxu0 %v158
    %v288 = vpop.f32.mrf.mxu0
    %v289 = vadd.f32 %v269, %v288
    %290 = vdwg.mxu0
    %291 = vmatpush.msra.mxu0 %v130
    %292 = vmatpush.msra.mxu0 %v129
    %293 = vmatpush.msra.mxu0 %v128
    %294 = vmatpush.msra.mxu0 %v127
    %295 = vmatpush.msra.mxu0 %v126
    %296 = vmatpush.msra.mxu0 %v125
    %297 = vmatpush.msra.mxu0 %v124
    %298 = vmatpush.msra.mxu0 %v123
    %299 = vmatpush.msra.mxu0 %v122
    %300 = vmatpush.msra.mxu0 %v121
    %301 = vmatpush.msra.mxu0 %v120
    %302 = vmatpush.msra.mxu0 %v119
    %303 = vmatpush.msra.mxu0 %v118
    %304 = vmatpush.msra.mxu0 %v117
    %305 = vmatpush.msra.mxu0 %v116
    %306 = vmatpush.msra.mxu0 %v115
    %307 = vmatmul.f32.gmra.mxu0 %v159
    %v308 = vpop.f32.mrf.mxu0
    %v309 = vadd.f32 %v289, %v308
    %310 = vdwg.mxu0
    %311 = vmatpush.msra.mxu0 0.0
    %312 = vmatpush.msra.mxu0 0.0
    %313 = vmatpush.msra.mxu0 0.0
    %314 = vmatpush.msra.mxu0 %v143
    %315 = vmatpush.msra.mxu0 %v142
    %316 = vmatpush.msra.mxu0 %v141
    %317 = vmatpush.msra.mxu0 %v140
    %318 = vmatpush.msra.mxu0 %v139
    %319 = vmatpush.msra.mxu0 %v138
    %320 = vmatpush.msra.mxu0 %v137
    %321 = vmatpush.msra.mxu0 %v136
    %322 = vmatpush.msra.mxu0 %v135
    %323 = vmatpush.msra.mxu0 %v134
    %324 = vmatpush.msra.mxu0 %v133
    %325 = vmatpush.msra.mxu0 %v132
    %326 = vmatpush.msra.mxu0 %v131
    %327 = vmatmul.f32.gmra.mxu0 %v169
    %v328 = vpop.f32.mrf.mxu0
    %v329 = vadd.f32 %v309, %v328
    %330 = vdwg.mxu0
    %vm331 = vcmask 304128
    %332 = vst.msk [vmem:[#allocation2] sm:$0x3] %vm331, %v329
    // Predicated region
    $region14: #{mynet_forward.1} parent=1 // pred_check
      _
    $region15: #{mynet_forward.1} parent=1 // pred_check_branch
      %334 = sbr.rel (0) target = $region17
    $region16: #{mynet_forward.1} parent=1 // pred_region
      %336 = vsyncadd [#allocation3], 0
      %s338 = sshll.u32 [#allocation2], 4
      %s339 = int_to_ptr.vmem [resolvable:$true] %s338
      %s340 = sshll.u32 %s3, 4
      %s341 = int_to_ptr.hbm [resolvable:$true] %s340
      %343 = dma.vmem_to_hbm [thread:$0]  %s339, 32, %s341, [#allocation3]
    $region17: #{mynet_forward.1} parent=1 // pred_fallthru
      _
    // Predicated region
    $region18: #{mynet_forward.1} parent=1 // pred_check
      _
    $region19: #{mynet_forward.1} parent=1 // pred_check_branch
      %345 = sbr.rel (0) target = $region21
    $region20: #{mynet_forward.1} parent=1 // pred_region
      %347 = dma.done [#allocation3], 32
    $region21: #{mynet_forward.1} parent=1 // pred_fallthru
      _
    %348 = vsyncpa [#allocation3], 1

</llo_original>
